<compile_context>
chip_gen: v6e
topology: v6e:2x2x1
jax: 0.10.0
libtpu: 0.0.40
codegen_flags: <defaults>
</compile_context>

<pallas_src>
import functools

import jax
import jax.numpy as jnp
import numpy as np
from jax.experimental import pallas as pl
from jax.experimental.pallas import tpu as pltpu


def _mbstd_kernel(x_ref, o_ref, *, C, alpha):
    x = x_ref[...].astype(jnp.float32)                 # (G, MB, C, HW)
    G, MB, _, HW = x.shape

    # Std-dev across the group axis for every (column, channel, pixel).
    mu = jnp.mean(x, axis=0, keepdims=True)            # (1, MB, C, HW)
    d = x - mu
    var = jnp.mean(d * d, axis=0, keepdims=True)       # (1, MB, C, HW)
    std = jnp.sqrt(var + alpha)

    # Mean over (C, H*W) -> one scalar per group column.
    s = jnp.sum(std, axis=3, keepdims=True)            # (1, MB, C, 1)
    s = jnp.sum(s, axis=2, keepdims=True) * (1.0 / (C * HW))   # (1, MB, 1, 1)

    # Fused write: copy-through of x plus the broadcast stat channel.
    o_ref[:, :, :C, :] = x.astype(o_ref.dtype)
    o_ref[:, :, C:, :] = jnp.broadcast_to(s, (G, MB, 1, HW)).astype(o_ref.dtype)


def minibatch_stddev_forward(x, group_size=4, alpha=1e-8):
    B, C, H, W = x.shape
    if B > group_size:
        assert B % group_size == 0, (
            f"batch_size {B} should be perfectly divisible by group_size {group_size}")
        G = group_size
    else:
        G = B
    M = B // G
    HW = H * W

    # Free (contiguous) view: sample b = g*M + m lives at x_r[g, m].
    x_r = x.reshape(G, M, C, HW)

    # Group columns per grid step: amortize per-step overhead while keeping the
    # double-buffered input+output tiles comfortably inside VMEM (~2 MiB tile).
    itemsize = max(jnp.dtype(x.dtype).itemsize, 4)
    per_col = G * (2 * C + 1) * HW * itemsize
    MB = max(1, min(M, (2 << 20) // max(per_col, 1)))
    while M % MB:
        MB -= 1

    kernel = functools.partial(_mbstd_kernel, C=C, alpha=float(alpha))

    out = pl.pallas_call(
        kernel,
        out_shape=jax.ShapeDtypeStruct((G, M, C + 1, HW), x.dtype),
        grid_spec=pltpu.PrefetchScalarGridSpec(
            num_scalar_prefetch=0,
            grid=(M // MB,),
            in_specs=[pl.BlockSpec((G, MB, C, HW), lambda j: (0, j, 0, 0))],
            out_specs=pl.BlockSpec((G, MB, C + 1, HW), lambda j: (0, j, 0, 0)),
        ),
        compiler_params=pltpu.CompilerParams(
            dimension_semantics=("parallel",)),
    )(x_r)

    # Free view back to NCHW with the appended channel.
    return out.reshape(B, C + 1, H, W)


# ------------------------- pure-JAX reference -------------------------
def minibatch_stddev_reference(x, group_size=4, alpha=1e-8):
    B, C, H, W = x.shape
    G = group_size if B > group_size else B
    y = x.reshape(G, -1, C, H, W)
    y = y - jnp.mean(y, axis=0, keepdims=True)
    y = jnp.sqrt(jnp.mean(y * y, axis=0) + alpha)       # (M, C, H, W)
    y = jnp.mean(y, axis=(1, 2, 3), keepdims=True)      # (M, 1, 1, 1)
    y = jnp.tile(y, (G, 1, H, W))                       # (B, 1, H, W)
    return jnp.concatenate([x, y], axis=1)


if __name__ == "__main__":
    # Case 1: batch <= group_size -> group collapses to the whole batch (G=2, M=1).
    x1 = jax.random.normal(jax.random.PRNGKey(0), (2, 4, 16, 16), jnp.float32)
    out1 = jax.block_until_ready(minibatch_stddev_forward(x1, group_size=4))
    ref1 = jax.block_until_ready(minibatch_stddev_reference(x1, group_size=4))
    assert out1.shape == (2, 5, 16, 16), out1.shape
    np.testing.assert_allclose(np.asarray(out1), np.asarray(ref1),
                               rtol=1e-5, atol=1e-5)

    # Case 2: batch > group_size -> G=4, M=2 (multiple group columns).
    x2 = jax.random.normal(jax.random.PRNGKey(1), (8, 4, 16, 16), jnp.float32)
    out2 = jax.block_until_ready(minibatch_stddev_forward(x2, group_size=4))
    ref2 = jax.block_until_ready(minibatch_stddev_reference(x2, group_size=4))
    assert out2.shape == (8, 5, 16, 16), out2.shape
    np.testing.assert_allclose(np.asarray(out2), np.asarray(ref2),
                               rtol=1e-5, atol=1e-5)

    print("KERNEL_OK")
</pallas_src>

<mosaic_0001>
module attributes {stable_mosaic.version = 11 : i64} {
  func.func @_mbstd_kernel(%arg0: i32, %arg1: memref<2x1x4x256xf32, #tpu.memory_space<vmem>>, %arg2: memref<2x1x5x256xf32, #tpu.memory_space<vmem>>) attributes {dimension_semantics = [#tpu.dimension_semantics<parallel>], iteration_bounds = array<i64: 1>, scalar_prefetch = 0 : i64, scratch_operands = 0 : i64, tpu.core_type = #tpu.core_type<tc>, window_params = [{transform_indices = @transform_0, window_bounds = array<i64: 2, 1, 4, 256>}, {transform_indices = @transform_1, window_bounds = array<i64: 2, 1, 5, 256>}]} {
    %c0 = arith.constant 0 : index
    %c0_0 = arith.constant 0 : index
    %c0_1 = arith.constant 0 : index
    %c0_2 = arith.constant 0 : index
    %0 = vector.load %arg1[%c0, %c0_0, %c0_1, %c0_2] : memref<2x1x4x256xf32, #tpu.memory_space<vmem>>, vector<2x1x4x256xf32>
    %cst = arith.constant dense<0.000000e+00> : vector<1x4x256xf32>
    %1 = vector.multi_reduction <add>, %0, %cst [0] : vector<2x1x4x256xf32> to vector<1x4x256xf32>
    %2 = vector.shape_cast %1 : vector<1x4x256xf32> to vector<1x1x4x256xf32>
    %cst_3 = arith.constant 2.000000e+00 : f32
    %3 = vector.broadcast %cst_3 : f32 to vector<1x1x4x256xf32>
    %4 = arith.divf %2, %3 : vector<1x1x4x256xf32>
    %5 = vector.broadcast %4 : vector<1x1x4x256xf32> to vector<2x1x4x256xf32>
    %6 = arith.subf %0, %5 : vector<2x1x4x256xf32>
    %7 = arith.mulf %6, %6 : vector<2x1x4x256xf32>
    %cst_4 = arith.constant dense<0.000000e+00> : vector<1x4x256xf32>
    %8 = vector.multi_reduction <add>, %7, %cst_4 [0] : vector<2x1x4x256xf32> to vector<1x4x256xf32>
    %9 = vector.shape_cast %8 : vector<1x4x256xf32> to vector<1x1x4x256xf32>
    %cst_5 = arith.constant 2.000000e+00 : f32
    %10 = vector.broadcast %cst_5 : f32 to vector<1x1x4x256xf32>
    %11 = arith.divf %9, %10 : vector<1x1x4x256xf32>
    %cst_6 = arith.constant 9.99999993E-9 : f32
    %12 = vector.broadcast %cst_6 : f32 to vector<1x1x4x256xf32>
    %13 = arith.addf %11, %12 : vector<1x1x4x256xf32>
    %14 = math.sqrt %13 : vector<1x1x4x256xf32>
    %cst_7 = arith.constant dense<0.000000e+00> : vector<1x1x4xf32>
    %15 = vector.multi_reduction <add>, %14, %cst_7 [3] : vector<1x1x4x256xf32> to vector<1x1x4xf32>
    %16 = vector.shape_cast %15 : vector<1x1x4xf32> to vector<1x1x4x1xf32>
    %cst_8 = arith.constant dense<0.000000e+00> : vector<1x1x1xf32>
    %17 = vector.multi_reduction <add>, %16, %cst_8 [2] : vector<1x1x4x1xf32> to vector<1x1x1xf32>
    %18 = vector.shape_cast %17 : vector<1x1x1xf32> to vector<1x1x1x1xf32>
    %cst_9 = arith.constant 9.765625E-4 : f32
    %19 = vector.broadcast %cst_9 : f32 to vector<1x1x1x1xf32>
    %20 = arith.mulf %18, %19 : vector<1x1x1x1xf32>
    %c0_10 = arith.constant 0 : index
    %c0_11 = arith.constant 0 : index
    %c0_12 = arith.constant 0 : index
    %c0_13 = arith.constant 0 : index
    %21 = vector.load %arg2[%c0_10, %c0_11, %c0_12, %c0_13] : memref<2x1x5x256xf32, #tpu.memory_space<vmem>>, vector<2x1x4x256xf32>
    tpu.vector_store %arg2[%c0_10, %c0_11, %c0_12, %c0_13], %0 {strides = array<i32>} : memref<2x1x5x256xf32, #tpu.memory_space<vmem>>, vector<2x1x4x256xf32>,
    %22 = vector.shape_cast %20 : vector<1x1x1x1xf32> to vector<1x1x1x1xf32>
    %23 = vector.broadcast %22 : vector<1x1x1x1xf32> to vector<2x1x1x256xf32>
    %c0_14 = arith.constant 0 : index
    %c0_15 = arith.constant 0 : index
    %c4 = arith.constant 4 : index
    %c0_16 = arith.constant 0 : index
    %24 = vector.load %arg2[%c0_14, %c0_15, %c4, %c0_16] : memref<2x1x5x256xf32, #tpu.memory_space<vmem>>, vector<2x1x1x256xf32>
    tpu.vector_store %arg2[%c0_14, %c0_15, %c4, %c0_16], %23 {strides = array<i32>} : memref<2x1x5x256xf32, #tpu.memory_space<vmem>>, vector<2x1x1x256xf32>,
    return
  }
  func.func @transform_0(%arg0: i32) -> (i32, i32, i32, i32) {
    %c0_i32 = arith.constant 0 : i32
    %c0_i32_0 = arith.constant 0 : i32
    %c0_i32_1 = arith.constant 0 : i32
    %c0_i32_2 = arith.constant 0 : i32
    return %c0_i32, %arg0, %c0_i32_0, %c0_i32_1 : i32, i32, i32, i32
  }
  func.func @transform_1(%arg0: i32) -> (i32, i32, i32, i32) {
    %c0_i32 = arith.constant 0 : i32
    %c0_i32_0 = arith.constant 0 : i32
    %c0_i32_1 = arith.constant 0 : i32
    %c0_i32_2 = arith.constant 0 : i32
    return %c0_i32, %arg0, %c0_i32_0, %c0_i32_1 : i32, i32, i32, i32
  }
}

</mosaic_0001>

<llo_original>
// kernel: tpu_custom_call.1
$region0: #{tpu_custom_call.1}
  #allocation0 [shape = 'u32[]', space=smem, size = 0x4, offset = 0x4, fixed_abs, tag = 'smem constant byte address 0x4 - core index']
  #allocation1 [shape = 'u32[144,128]{1,0:T(1,128)}', space=vmem, size = 0x12000, scoped, tag = 'internal scratch']
  %s0 = inlined_call_operand.hbm [shape: f32[2,1,4,256], index: 0, kind: input, shape index: {}]
  %s1 = inlined_call_operand.vmem [shape: f32[2,1,5,256], index: 1, kind: output, shape index: {}]
  %s2 = sld [smem:[#allocation0]]
  $region18: #{tpu_custom_call.1} parent=0
    _
  %s4 = ssub.s32 1, %s2
  %s5 = scalar_select 0, %s4, %s2
  $region1: #{tpu_custom_call.1} parent=0
    #allocation2 [shape = 'u8[8192]{0}', space=vmem, size = 0x2000, scoped, tag = 'input window, operand 0, single buffered']
    #allocation3 [shape = 's32[1]{0}', space=sflag, size = 0x4, scoped, tag = 'scoped memory for tpu_custom_call.1']
    %6 = vsyncpa [#allocation3], 0
    // Predicated region
    $region2: #{tpu_custom_call.1} parent=1 // pred_check
      _
    $region3: #{tpu_custom_call.1} parent=1 // pred_check_branch
      %8 = sbr.rel (0) target = $region5
    $region4: #{tpu_custom_call.1} parent=1 // pred_region
      %s10 = ssub.s32 256, 256
      %11 = vsyncadd [#allocation3], %s10
      %s12 = sshll.u32 [#allocation2], 4
      %s13 = int_to_ptr.vmem [resolvable:$true] %s12
      %18 = dma.hbm_to_vmem [thread:$0]  %s0, 256, %s13, [#allocation3], 128, 128, 8
    $region5: #{tpu_custom_call.1} parent=1 // pred_fallthru
      _
    // Predicated region
    $region6: #{tpu_custom_call.1} parent=1 // pred_check
      _
    $region7: #{tpu_custom_call.1} parent=1 // pred_check_branch
      %20 = sbr.rel (0) target = $region9
    $region8: #{tpu_custom_call.1} parent=1 // pred_region
      %21 = dma.done [#allocation3], 256
    $region9: #{tpu_custom_call.1} parent=1 // pred_fallthru
      _
    %v22 = vld [vmem:[#allocation2] sm:$0xff]
    %v23 = vld [vmem:[#allocation2 + $0x8] sm:$0xff]
    %v26 = vcombine.high %v22, %v22
    %v27 = vcombine.high %v23, %v23
    %vm30 = vcmask 1043456
    %v31 = vsel %vm30, %v22, 0.0
    %v32 = vsel %vm30, %v23, 0.0
    %v33 = vadd.f32 %v31, %v32
    %v34 = vsel %vm30, %v26, 0.0
    %v35 = vsel %vm30, %v27, 0.0
    %v36 = vadd.f32 %v34, %v35
    %v37 = vrcp.pop 2.0
    %v38 = vmul.f32 %v33, %v37
    %v39 = vmul.f32 %v36, %v37
    %v42 = vcombine.low %v38, %v39
    %v44 = vsub.f32 %v22, %v42
    %v45 = vsub.f32 %v23, %v42
    %v46 = vmul.f32 %v44, %v44
    %v47 = vmul.f32 %v45, %v45
    %v50 = vcombine.high %v46, %v46
    %v51 = vcombine.high %v47, %v47
    %v54 = vsel %vm30, %v46, 0.0
    %v55 = vsel %vm30, %v47, 0.0
    %v56 = vadd.f32 %v54, %v55
    %v57 = vsel %vm30, %v50, 0.0
    %v58 = vsel %vm30, %v51, 0.0
    %v59 = vadd.f32 %v57, %v58
    %v60 = vmul.f32 %v56, %v37
    %v61 = vmul.f32 %v59, %v37
    %v62 = vadd.f32 %v60, 1e-08
    %v63 = vadd.f32 %v61, 1e-08
    %v64 = vrsqrt.pop %v62
    %v65 = vmul.f32 %v62, %v64
    %vm66 = vcmp.eq.f32.partialorder %v62, inf
    %v67 = vsel %vm66, %v62, %v65
    %vm68 = vcmp.eq.f32.partialorder %v62, 0.0
    %v69 = vand.u32 %v62, 2147483648
    %v70 = vsel %vm68, %v69, %v67
    %v71 = vrsqrt.pop %v63
    %v72 = vmul.f32 %v63, %v71
    %vm73 = vcmp.eq.f32.partialorder %v63, inf
    %v74 = vsel %vm73, %v63, %v72
    %vm75 = vcmp.eq.f32.partialorder %v63, 0.0
    %v76 = vand.u32 %v63, 2147483648
    %v77 = vsel %vm75, %v76, %v74
    %v78 = vsel %vm30, %v70, 0.0
    %v79 = vsel %vm30, %v77, 0.0
    %v80 = vadd.f32 %v78, %v79
    %81 = vadd.xlane.f32.xlu0 %v80
    %v82 = vpop.xlane.xlu0 %81
    %v83 = vsel %vm30, %v82, 0.0
    %v84 = vrot.slane %v83, 4
    %v85 = vadd.f32 %v83, %v84
    %v86 = vrot.slane %v85, 2
    %v87 = vadd.f32 %v85, %v86
    %v88 = vrot.slane %v87, 1
    %v89 = vadd.f32 %v87, %v88
    %v90 = vmul.f32 %v89, 0.0009765625
    %91 = vst [vmem:[%s1] sm:$0xf] %v22
    %92 = vst [vmem:[%s1 + $0x8] sm:$0xf] %v26
    %93 = vst [vmem:[%s1 + $0x10] sm:$0xf] %v23
    %94 = vst [vmem:[%s1 + $0x18] sm:$0xf] %v27
    %v95 = vlaneseq
    %vm96 = vcmp.ge.s32.totalorder %v95, 0
    %vm97 = vcmp.lt.s32.totalorder %v95, 256
    %vm98 = vmand %vm96, %vm97
    %s99 = scalar_lea.vmem %s1, 4
    %100 = vst.msk [vmem:[%s99] ss:$8 sm:$0x3] %vm98, %v90
    %101 = vst.msk [vmem:[%s99] ss:$8 sm:$0x0] %vm98, %v90
    %s102 = scalar_lea.vmem %s1, 20
    %103 = vst.msk [vmem:[%s102] ss:$8 sm:$0x3] %vm98, %v90
    %104 = vst.msk [vmem:[%s102] ss:$8 sm:$0x0] %vm98, %v90
    // Predicated region
    $region10: #{tpu_custom_call.1} parent=1 // pred_check
      _
    $region11: #{tpu_custom_call.1} parent=1 // pred_check_branch
      %106 = sbr.rel (0) target = $region13
    $region12: #{tpu_custom_call.1} parent=1 // pred_region
      _
    $region13: #{tpu_custom_call.1} parent=1 // pred_fallthru
      _
    // Predicated region
    $region14: #{tpu_custom_call.1} parent=1 // pred_check
      _
    $region15: #{tpu_custom_call.1} parent=1 // pred_check_branch
      %108 = sbr.rel (0) target = $region17
    $region16: #{tpu_custom_call.1} parent=1 // pred_region
      _
    $region17: #{tpu_custom_call.1} parent=1 // pred_fallthru
      _
    %109 = vsyncpa [#allocation3], 1

</llo_original>
